<compile_context>
chip_gen: v7x
topology: tpu7x:2x2x1
jax: 0.10.0
libtpu: 0.0.40
codegen_flags: <defaults>
</compile_context>

<pallas_src>
import jax
import jax.numpy as jnp
from jax.experimental import pallas as pl
from jax.experimental.pallas import tpu as pltpu


def _identity_kernel(dir_ref, o_ref):
    # Hot path of network.forward: the output IS `dir` (aliased buffer).
    o_ref[...] = dir_ref[...]


def _pallas_identity(x):
    """Minimal-overhead Pallas identity: gridless, aliased, lane-dense."""
    flat = x.reshape(1, x.size)  # lane-dense view; reshape is free in XLA
    out = pl.pallas_call(
        _identity_kernel,
        out_shape=jax.ShapeDtypeStruct(flat.shape, flat.dtype),
        in_specs=[pl.BlockSpec(memory_space=pltpu.MemorySpace.VMEM)],
        out_specs=pl.BlockSpec(memory_space=pltpu.MemorySpace.VMEM),
        input_output_aliases={0: 0},  # output reuses the input buffer
    )(flat)
    return out.reshape(x.shape)


@jax.jit
def network_forward(dir, input_pcs, ctpt, joint_info, f_dir, hidden_info):
    """Exact reproduction of `network.forward`: returns `dir` unchanged.

    The unused arguments are accepted to mirror the PyTorch signature; they do
    not influence the result (as in the reference module).

    Note: a plain `return dir` is the zero-cost optimum; the Pallas identity
    below is retained only so the forward pass exercises a kernel, and is
    reduced to the cheapest possible form (gridless + aliased + lane-dense).
    """
    del input_pcs, ctpt, joint_info, f_dir, hidden_info  # unused by forward()
    return _pallas_identity(dir)


if __name__ == "__main__":
    key = jax.random.PRNGKey(0)
    k1, k2, k3, k4, k5, k6 = jax.random.split(key, 6)

    B = 2          # batch
    N = 16         # points per cloud (small, synthetic)
    HIDDEN_DIM = 2

    # Shapes consistent with what Critic.forward would consume.
    dir_ = jax.random.normal(k1, (B, 3), dtype=jnp.float32)
    input_pcs = jax.random.normal(k2, (B, N, 3), dtype=jnp.float32)
    ctpt = jax.random.normal(k3, (B, 3), dtype=jnp.float32)
    joint_info = jax.random.normal(k4, (B, 4), dtype=jnp.float32)
    f_dir = jax.random.normal(k5, (B, 3), dtype=jnp.float32)
    hidden_info = jax.random.normal(k6, (B, HIDDEN_DIM), dtype=jnp.float32)

    out = network_forward(dir_, input_pcs, ctpt, joint_info, f_dir, hidden_info)
    out = jax.block_until_ready(out)

    # Semantic check: forward returns `dir` exactly.
    assert out.shape == dir_.shape and out.dtype == dir_.dtype
    assert bool(jnp.all(out == dir_))

    print("KERNEL_OK")
</pallas_src>

<mosaic_0001>
module attributes {stable_mosaic.version = 11 : i64} {
  func.func @_identity_kernel(%arg0: memref<1x6xf32, #tpu.memory_space<vmem>>, %arg1: memref<1x6xf32, #tpu.memory_space<vmem>>) attributes {dimension_semantics = [], scalar_prefetch = 0 : i64, scratch_operands = 0 : i64, tpu.core_type = #tpu.core_type<tc>} {
    %c0 = arith.constant 0 : index
    %c0_0 = arith.constant 0 : index
    %0 = vector.load %arg0[%c0, %c0_0] : memref<1x6xf32, #tpu.memory_space<vmem>>, vector<1x6xf32>
    %c0_1 = arith.constant 0 : index
    %c0_2 = arith.constant 0 : index
    %1 = vector.load %arg1[%c0_1, %c0_2] : memref<1x6xf32, #tpu.memory_space<vmem>>, vector<1x6xf32>
    tpu.vector_store %arg1[%c0_1, %c0_2], %0 {strides = array<i32>} : memref<1x6xf32, #tpu.memory_space<vmem>>, vector<1x6xf32>,
    return
  }
}

</mosaic_0001>

<llo_original>
// kernel: network_forward.1
$region0: #{network_forward.1}
  #allocation0 [shape = 'u32[]', space=smem, size = 0x4, offset = 0x4, fixed_abs, tag = 'smem constant byte address 0x4 - core index']
  #allocation1 [shape = 'u32[144,128]{1,0:T(1,128)}', space=vmem, size = 0x12000, scoped, tag = 'internal scratch']
  %s0 = inlined_call_operand.vmem [shape: f32[1,6], index: 0, kind: input, shape index: {}, may-alias: {0,1}]
  %s1 = inlined_call_operand.vmem [shape: f32[1,6], index: 1, kind: output, shape index: {}, may-alias: {0,1}]
  %s2 = sld [smem:[#allocation0]]
  $region14: #{network_forward.1} parent=0
    _
  %s4 = ssub.s32 1, %s2
  %s5 = scalar_select 0, %s4, %s2
  // Predicated region
  $region2: #{network_forward.1} parent=0 // pred_check
    _
  $region3: #{network_forward.1} parent=0 // pred_check_branch
    %7 = sbr.rel (0) target = $region5
  $region4: #{network_forward.1} parent=0 // pred_region
    _
  $region5: #{network_forward.1} parent=0 // pred_fallthru
    _
  %v8 = vld [vmem:[%s0] sm:$0x1]
  %vm9 = vcmask 40960
  %10 = vst.msk [vmem:[%s1] sm:$0x1] %vm9, %v8
  // Predicated region
  $region6: #{network_forward.1} parent=0 // pred_check
    _
  $region7: #{network_forward.1} parent=0 // pred_check_branch
    %12 = sbr.rel (0) target = $region9
  $region8: #{network_forward.1} parent=0 // pred_region
    _
  $region9: #{network_forward.1} parent=0 // pred_fallthru
    _
  // Predicated region
  $region10: #{network_forward.1} parent=0 // pred_check
    _
  $region11: #{network_forward.1} parent=0 // pred_check_branch
    %14 = sbr.rel (0) target = $region13
  $region12: #{network_forward.1} parent=0 // pred_region
    _
  $region13: #{network_forward.1} parent=0 // pred_fallthru
    _

</llo_original>
